<compile_context>
chip_gen: v7x
topology: tpu7x:2x2x1
jax: 0.10.0
libtpu: 0.0.40
codegen_flags: <defaults>
</compile_context>

<pallas_src>
import jax
import jax.numpy as jnp
from jax.experimental import pallas as pl
from jax.experimental.pallas import tpu as pltpu


def _gradnorm_fused_kernel(l_ref, w_ref, out_ref):
    """l_ref, w_ref: (1, T) VMEM, native dtype.
    out_ref: (2, T) VMEM f32, row 0 = L_t * w, row 1 = sum(L_t * w) broadcast."""
    l = l_ref[...].astype(jnp.float32)               # in-kernel cast (VPU)
    w = w_ref[...].astype(jnp.float32)               # in-kernel cast (VPU)
    prod = l * w                                     # (1, T) weighted losses (VPU)
    total = jnp.sum(prod, axis=1, keepdims=True)     # (1, 1) cross-lane reduce (XLU)
    # Build the full (2, T) tile and store it once: a single unmasked vst
    # instead of two masked sublane-sliced partial stores.
    out_ref[...] = jnp.concatenate(
        [prod, jnp.broadcast_to(total, prod.shape)], axis=0
    )


def _forward_impl(L_t, w):
    T = L_t.shape[0]
    # No stack: two separate VMEM inputs (the (1, T) reshapes are metadata-only
    # inside the jit, unlike the old stack which wrote a new HBM buffer).
    out = pl.pallas_call(
        _gradnorm_fused_kernel,
        out_shape=jax.ShapeDtypeStruct((2, T), jnp.float32),
        # No grid: kernel runs once over the full (tiny) arrays in VMEM.
        in_specs=[
            pl.BlockSpec(memory_space=pltpu.MemorySpace.VMEM),
            pl.BlockSpec(memory_space=pltpu.MemorySpace.VMEM),
        ],
        out_specs=pl.BlockSpec(memory_space=pltpu.MemorySpace.VMEM),
    )(L_t.reshape(1, T), w.reshape(1, T))
    wl_t = out[0]        # (T,)   == L_t * w
    total = out[1, 0]    # scalar == sum(L_t * w)
    return wl_t, total


@jax.custom_vjp
def _gradnorm_forward(L_t, w):
    return _forward_impl(L_t, w)


def _gradnorm_fwd(L_t, w):
    return _forward_impl(L_t, w), (L_t, w)


def _gradnorm_bwd(residuals, cotangents):
    L_t, w = residuals
    g_wl, g_total = cotangents
    # wL_t = L_t * w ; total = sum(L_t * w).
    # Factor the cotangents once (g_total broadcasts over the (T,) g_wl).
    gw = g_wl + g_total
    dL_t = (gw * w).astype(L_t.dtype)
    dw = (gw * L_t).astype(w.dtype)
    return dL_t, dw


_gradnorm_forward.defvjp(_gradnorm_fwd, _gradnorm_bwd)

# One device dispatch per forward(); differentiable w.r.t. both L_t and w.
gradnorm_forward = jax.jit(_gradnorm_forward)


def gradnorm_forward_jnp(L_t, w):
    """Pure-jnp path: compose this into the jitted graph that produces L_t to
    avoid the pallas_call fusion barrier entirely (preferred at small T)."""
    wl = L_t * w
    return wl, wl.sum()


class GradNormLoss:
    """JAX/Pallas port of the PyTorch GradNormLoss forward pass."""

    def __init__(self, num_of_task: int, alpha: float = 1.5, use_pallas: bool = True):
        self.num_of_task = num_of_task
        self.alpha = alpha
        self.use_pallas = use_pallas
        # nn.Parameter(torch.ones(num_of_task)) -- deterministic init,
        # cached device-side and reused every call.
        self.w = jnp.ones((num_of_task,), dtype=jnp.float32)
        self.cnt = 0
        self.L_0 = None
        # TODO(synk): additional_forward_and_backward needs torch.autograd over an
        # external network's parameters (per-task grad norms, L1 loss, in-place w
        # renormalization); that graph-dependent step has no standalone Pallas
        # equivalent and is not implemented here.

    def forward(self, L_t: jnp.ndarray):
        if self.L_0 is None or self.cnt % 1000 == 0:
            self.L_0 = jax.lax.stop_gradient(L_t)
        self.cnt += 1
        self.L_t = L_t
        if self.use_pallas:
            # One fused, jitted launch produces both wL_t and the total loss.
            self.wL_t, self.total_loss = gradnorm_forward(L_t, self.w)
        else:
            self.wL_t, self.total_loss = gradnorm_forward_jnp(L_t, self.w)
        return self.total_loss

    __call__ = forward


if __name__ == "__main__":
    num_of_task = 8
    key = jax.random.PRNGKey(0)
    # Per-task losses: small deterministic positive vector.
    L_t = jax.random.uniform(key, (num_of_task,), dtype=jnp.float32) + 0.1

    module = GradNormLoss(num_of_task, alpha=1.5)
    total = module(L_t)
    total = jax.block_until_ready(total)

    # Reference check in plain JAX.
    wl_ref = L_t * module.w
    tot_ref = jnp.sum(wl_ref)
    assert jnp.allclose(total, tot_ref, rtol=1e-6, atol=1e-6), (total, tot_ref)
    assert jnp.allclose(module.wL_t, wl_ref, rtol=1e-6, atol=1e-6)

    # GradNorm needs d total_loss / d w = L_t; verify the custom VJP path.
    g_w = jax.grad(lambda w: gradnorm_forward(L_t, w)[1])(module.w)
    g_w = jax.block_until_ready(g_w)
    assert jnp.allclose(g_w, L_t, rtol=1e-6, atol=1e-6), (g_w, L_t)

    # d total_loss / d L_t = w.
    g_l = jax.grad(lambda l: gradnorm_forward(l, module.w)[1])(L_t)
    g_l = jax.block_until_ready(g_l)
    assert jnp.allclose(g_l, module.w, rtol=1e-6, atol=1e-6), (g_l, module.w)

    print("KERNEL_OK")
</pallas_src>

<mosaic_0001>
module attributes {stable_mosaic.version = 11 : i64} {
  func.func @_gradnorm_fused_kernel(%arg0: memref<1x8xf32, #tpu.memory_space<vmem>>, %arg1: memref<1x8xf32, #tpu.memory_space<vmem>>, %arg2: memref<2x8xf32, #tpu.memory_space<vmem>>) attributes {dimension_semantics = [], scalar_prefetch = 0 : i64, scratch_operands = 0 : i64, tpu.core_type = #tpu.core_type<tc>} {
    %c0 = arith.constant 0 : index
    %c0_0 = arith.constant 0 : index
    %0 = vector.load %arg0[%c0, %c0_0] : memref<1x8xf32, #tpu.memory_space<vmem>>, vector<1x8xf32>
    %c0_1 = arith.constant 0 : index
    %c0_2 = arith.constant 0 : index
    %1 = vector.load %arg1[%c0_1, %c0_2] : memref<1x8xf32, #tpu.memory_space<vmem>>, vector<1x8xf32>
    %2 = arith.mulf %0, %1 : vector<1x8xf32>
    %cst = arith.constant dense<0.000000e+00> : vector<1xf32>
    %3 = vector.multi_reduction <add>, %2, %cst [1] : vector<1x8xf32> to vector<1xf32>
    %4 = vector.shape_cast %3 : vector<1xf32> to vector<1x1xf32>
    %5 = vector.shape_cast %4 : vector<1x1xf32> to vector<1x1xf32>
    %6 = vector.broadcast %5 : vector<1x1xf32> to vector<1x8xf32>
    %7 = tpu.concatenate %2, %6 in 0 : vector<1x8xf32>, vector<1x8xf32> -> vector<2x8xf32>
    %c0_3 = arith.constant 0 : index
    %c0_4 = arith.constant 0 : index
    %8 = vector.load %arg2[%c0_3, %c0_4] : memref<2x8xf32, #tpu.memory_space<vmem>>, vector<2x8xf32>
    tpu.vector_store %arg2[%c0_3, %c0_4], %7 {strides = array<i32>} : memref<2x8xf32, #tpu.memory_space<vmem>>, vector<2x8xf32>,
    return
  }
}

</mosaic_0001>

<llo_original>
// kernel: _gradnorm_forward.1
$region0: #{_gradnorm_forward.1}
  #allocation0 [shape = 'u32[]', space=smem, size = 0x4, offset = 0x4, fixed_abs, tag = 'smem constant byte address 0x4 - core index']
  #allocation1 [shape = 'u32[144,128]{1,0:T(1,128)}', space=vmem, size = 0x12000, scoped, tag = 'internal scratch']
  %s0 = inlined_call_operand.vmem [shape: f32[1,8], index: 0, kind: input, shape index: {}]
  %s1 = inlined_call_operand.vmem [shape: f32[1,8], index: 1, kind: input, shape index: {}]
  %s2 = inlined_call_operand.vmem [shape: f32[2,8], index: 2, kind: output, shape index: {}]
  %s3 = sld [smem:[#allocation0]]
  $region18: #{_gradnorm_forward.1} parent=0
    _
  %s5 = ssub.s32 1, %s3
  %s6 = scalar_select 0, %s5, %s3
  // Predicated region
  $region2: #{_gradnorm_forward.1} parent=0 // pred_check
    _
  $region3: #{_gradnorm_forward.1} parent=0 // pred_check_branch
    %8 = sbr.rel (0) target = $region5
  $region4: #{_gradnorm_forward.1} parent=0 // pred_region
    _
  $region5: #{_gradnorm_forward.1} parent=0 // pred_fallthru
    _
  // Predicated region
  $region6: #{_gradnorm_forward.1} parent=0 // pred_check
    _
  $region7: #{_gradnorm_forward.1} parent=0 // pred_check_branch
    %10 = sbr.rel (0) target = $region9
  $region8: #{_gradnorm_forward.1} parent=0 // pred_region
    _
  $region9: #{_gradnorm_forward.1} parent=0 // pred_fallthru
    _
  %v11 = vld [vmem:[%s0] sm:$0x1]
  %v12 = vld [vmem:[%s1] sm:$0x1]
  %v13 = vmul.f32 %v11, %v12
  %vm14 = vcmask 57344
  %v15 = vsel %vm14, %v13, 0.0
  %16 = vadd.xlane.f32.xlu0 %v15
  %v17 = vpop.xlane.xlu0 %16
  %v19 = vrot.slane %v17, 7
  %vm21 = vcmask 1040384
  %v22 = vsel %vm21, %v13, %v19
  %vm23 = vcmask 58368
  %24 = vst.msk [vmem:[%s2] sm:$0x3] %vm23, %v22
  // Predicated region
  $region10: #{_gradnorm_forward.1} parent=0 // pred_check
    _
  $region11: #{_gradnorm_forward.1} parent=0 // pred_check_branch
    %26 = sbr.rel (0) target = $region13
  $region12: #{_gradnorm_forward.1} parent=0 // pred_region
    _
  $region13: #{_gradnorm_forward.1} parent=0 // pred_fallthru
    _
  // Predicated region
  $region14: #{_gradnorm_forward.1} parent=0 // pred_check
    _
  $region15: #{_gradnorm_forward.1} parent=0 // pred_check_branch
    %28 = sbr.rel (0) target = $region17
  $region16: #{_gradnorm_forward.1} parent=0 // pred_region
    _
  $region17: #{_gradnorm_forward.1} parent=0 // pred_fallthru
    _

</llo_original>
